<compile_context>
chip_gen: v6e
topology: v6e:2x2x1
jax: 0.10.0
libtpu: 0.0.40
codegen_flags: <defaults>
</compile_context>

<pallas_src>
import jax
import jax.numpy as jnp
from jax.experimental import pallas as pl
from jax.experimental.pallas import tpu as pltpu

STATE_DIM = 3      # Pendulum-v1 observation_space.shape[0]
ACTION_DIM = 1     # Pendulum-v1 action_space.shape[0]
OUT_DIM = 1        # layer3 = Linear(200, action_shape)
HIDDEN = 200
HIDDEN_PAD = 256   # lane-aligned / one 256x256 MXU tile
BN_EPS = 1e-5

# Fused per-row input layout: [ state (3) | action (1) | b3 replicated (1) ].
# b3 rides as a replicated column so the final bias add happens in-kernel with a
# plain (B,1)+(B,1) elementwise add (no scalar-broadcast relayout, no extra launch).
SA_COLS = STATE_DIM + ACTION_DIM + 1
COL_ACTION = STATE_DIM
COL_B3 = STATE_DIM + ACTION_DIM

# Row layout of the packed small-parameter tile (PACK_ROWS, HIDDEN_PAD).
ROW_B1 = 0        # layer1 bias
ROW_GAMMA = 1     # BN weight (zero on padded columns!)
ROW_B2 = 2        # layer2 bias with BN beta folded in: b2 + beta @ W2s
ROW_W2A = 3       # action column of W2 as a row (ACTION_DIM == 1)
ROW_W3 = 4        # layer3 weights transposed to a row (OUT_DIM == 1)
ROW_W1 = 5        # STATE_DIM rows of W1 (as (in, out))
PACK_ROWS = 8
assert ROW_W1 + STATE_DIM <= PACK_ROWS
assert ACTION_DIM == 1 and OUT_DIM == 1  # packing layout is specialized to Pendulum shapes


def critic_q_kernel(sa_ref, packed_ref, w2s_hbm, out_ref, w2s_vmem, w2s_sem):
    # ---- kick off the 256x256 weight fetch first; it overlaps layer1 + BN ----
    w2s_copy = pltpu.make_async_copy(w2s_hbm, w2s_vmem, w2s_sem)
    w2s_copy.start()

    sa = sa_ref[...]                                    # (B, 5)
    state = sa[:, 0:STATE_DIM]                          # (B, 3)
    action = sa[:, COL_ACTION:COL_ACTION + 1]           # (B, 1)
    b3 = sa[:, COL_B3:COL_B3 + 1]                       # (B, 1), replicated layer3 bias
    packed = packed_ref[...]                            # (8, 256)

    b1 = packed[ROW_B1:ROW_B1 + 1, :]                   # (1, HIDDEN_PAD)
    gamma = packed[ROW_GAMMA:ROW_GAMMA + 1, :]
    b2 = packed[ROW_B2:ROW_B2 + 1, :]
    w2a = packed[ROW_W2A:ROW_W2A + 1, :]
    w3 = packed[ROW_W3:ROW_W3 + 1, :]

    # ---- layer1 + relu: K=3 degenerate matmul done as VPU broadcast-FMAs ----
    s = b1 + state[:, 0:1] * packed[ROW_W1:ROW_W1 + 1, :]
    for k in range(1, STATE_DIM):
        s = s + state[:, k:k + 1] * packed[ROW_W1 + k:ROW_W1 + k + 1, :]
    s = jnp.maximum(s, 0.0)                             # padded columns stay exactly 0

    # ---- BatchNorm1d(200), training-mode batch stats, single pass over s ----
    # var = E[s^2] - mean^2; normalization applied as one fused s*scale + shift.
    # beta is already folded into b2; gamma is zero on padded cols so nothing leaks.
    inv_b = 1.0 / s.shape[0]
    mean = jnp.sum(s, axis=0, keepdims=True) * inv_b
    ex2 = jnp.sum(s * s, axis=0, keepdims=True) * inv_b
    var = ex2 - mean * mean
    scale = gamma * jax.lax.rsqrt(var + BN_EPS)         # zero on padded cols
    s = s * scale + (-mean * scale)

    # ---- layer2 + relu: only the 256x256 block uses the MXU -----------------
    # cat([s, action]) @ W2 == s @ W2s + action @ W2a; the K=1 term is a VPU FMA.
    w2s_copy.wait()
    h = jnp.dot(s, w2s_vmem[...], preferred_element_type=jnp.float32)
    h = jnp.maximum(h + action * w2a + b2, 0.0)

    # ---- layer3 (N=1): VPU multiply + lane reduction; bias added in-kernel ---
    out_ref[...] = jnp.sum(h * w3, axis=-1, keepdims=True) + b3


def _vmem_limit_bytes():
    """Generation-aware scoped-VMEM limit: ~3/4 of physical, capped at 96 MiB."""
    default = 64 * 1024 * 1024
    try:
        cap = pltpu.get_tpu_info().vmem_capacity_bytes
    except Exception:  # info query unavailable (e.g. interpret mode)
        return default
    return int(min(96 * 1024 * 1024, (cap * 3) // 4))


def critic_q_forward(sa, packed, w2s_pad):
    B = sa.shape[0]
    vmem = pl.BlockSpec(memory_space=pltpu.MemorySpace.VMEM)
    return pl.pallas_call(
        critic_q_kernel,
        out_shape=jax.ShapeDtypeStruct((B, OUT_DIM), jnp.float32),
        in_specs=[vmem, vmem, pl.BlockSpec(memory_space=pl.ANY)],
        out_specs=vmem,
        scratch_shapes=[
            pltpu.VMEM((HIDDEN_PAD, HIDDEN_PAD), jnp.float32),  # w2s landing buffer
            pltpu.SemaphoreType.DMA,                            # its DMA semaphore
        ],
        compiler_params=pltpu.CompilerParams(vmem_limit_bytes=_vmem_limit_bytes()),
    )(sa, packed, w2s_pad)


def init_params(key):
    """Deterministic init mimicking PyTorch Linear defaults: U(-1/sqrt(fan_in), ...)."""
    def linear(k, fan_in, fan_out):
        kw, kb = jax.random.split(k)
        bound = 1.0 / jnp.sqrt(float(fan_in))
        w = jax.random.uniform(kw, (fan_in, fan_out), jnp.float32, -bound, bound)
        b = jax.random.uniform(kb, (1, fan_out), jnp.float32, -bound, bound)
        return w, b

    k1, k2, k3 = jax.random.split(key, 3)
    w1, b1 = linear(k1, STATE_DIM, HIDDEN)
    # layer2: in_features = HIDDEN + ACTION_DIM (see TODO at top)
    w2, b2 = linear(k2, HIDDEN + ACTION_DIM, HIDDEN)
    w3, b3 = linear(k3, HIDDEN, OUT_DIM)
    return {
        "w1": w1, "b1": b1,
        # BatchNorm1d affine params: PyTorch default weight=1, bias=0
        "gamma": jnp.ones((1, HIDDEN), jnp.float32),
        "beta": jnp.zeros((1, HIDDEN), jnp.float32),
        "w2s": w2[:HIDDEN, :], "w2a": w2[HIDDEN:, :], "b2": b2,
        "w3": w3, "b3": b3,
    }


def pack_params(p):
    """Pad HIDDEN -> HIDDEN_PAD and pack the small parameters into one (8, 256) tile.

    Padding rules that keep the math exact:
      * gamma padded columns are ZERO, so BN on dead columns yields exactly 0.
      * W2s padded rows AND columns are zero; b1/b2/w2a/w3 padded columns are zero.
      * beta is folded into b2 (b2' = b2 + beta @ W2s) — exact because the BN output
        feeds a linear layer (no nonlinearity in between).
      * b3 cannot be folded here (relu in between); it is carried as a replicated
        column of the fused state/action input and added in-kernel.
    """
    pad = HIDDEN_PAD - HIDDEN

    def pad_cols(x):
        return jnp.pad(x, ((0, 0), (0, pad)))

    b2_eff = p["b2"] + p["beta"] @ p["w2s"]                     # (1, HIDDEN)
    packed = jnp.zeros((PACK_ROWS, HIDDEN_PAD), jnp.float32)
    packed = packed.at[ROW_B1].set(pad_cols(p["b1"])[0])
    packed = packed.at[ROW_GAMMA].set(pad_cols(p["gamma"])[0])
    packed = packed.at[ROW_B2].set(pad_cols(b2_eff)[0])
    packed = packed.at[ROW_W2A].set(pad_cols(p["w2a"])[0])      # (1,200) -> row
    packed = packed.at[ROW_W3].set(pad_cols(p["w3"].T)[0])      # (200,1) -> (1,200)
    for k in range(STATE_DIM):
        packed = packed.at[ROW_W1 + k].set(pad_cols(p["w1"][k:k + 1, :])[0])

    w2s_pad = jnp.pad(p["w2s"], ((0, pad), (0, pad)))           # (256, 256)
    return packed, w2s_pad


def fuse_inputs(state, action, b3):
    """[state | action | b3-replicated]: one input DMA instead of two, and the
    layer3 bias add happens in-kernel instead of as a separate wrapper launch."""
    B = state.shape[0]
    b3_col = jnp.broadcast_to(jnp.reshape(b3, (1, 1)), (B, 1)).astype(jnp.float32)
    return jnp.concatenate([state, action, b3_col], axis=1)


def reference_forward(state, action, p):
    """Plain-JAX reference mirroring the PyTorch forward (training-mode BN)."""
    s = jax.nn.relu(state @ p["w1"] + p["b1"])
    mean = s.mean(axis=0, keepdims=True)
    var = ((s - mean) ** 2).mean(axis=0, keepdims=True)
    s = p["gamma"] * (s - mean) / jnp.sqrt(var + BN_EPS) + p["beta"]
    cat = jnp.concatenate([s, action], axis=1)
    w2 = jnp.concatenate([p["w2s"], p["w2a"]], axis=0)
    h = jax.nn.relu(cat @ w2 + p["b2"])
    return h @ p["w3"] + p["b3"]


if __name__ == "__main__":
    key = jax.random.PRNGKey(0)
    kp, ks, ka = jax.random.split(key, 3)

    B = 8
    state = jax.random.normal(ks, (B, STATE_DIM), jnp.float32)
    action = jax.random.normal(ka, (B, ACTION_DIM), jnp.float32)
    params = init_params(kp)
    packed, w2s_pad = pack_params(params)
    sa = fuse_inputs(state, action, params["b3"])

    out = jax.block_until_ready(critic_q_forward(sa, packed, w2s_pad))

    ref = reference_forward(state, action, params)
    assert out.shape == (B, OUT_DIM)
    assert jnp.allclose(out, ref, atol=1e-4, rtol=1e-4), (out, ref)

    print("KERNEL_OK")
</pallas_src>

<mosaic_0001>
module attributes {stable_mosaic.version = 11 : i64} {
  func.func @critic_q_kernel(%arg0: memref<8x5xf32, #tpu.memory_space<vmem>>, %arg1: memref<8x256xf32, #tpu.memory_space<vmem>>, %arg2: memref<256x256xf32, #tpu.memory_space<any>>, %arg3: memref<8x1xf32, #tpu.memory_space<vmem>>, %arg4: memref<256x256xf32, #tpu.memory_space<vmem>>, %arg5: memref<!tpu.dma_semaphore, #tpu.memory_space<semaphore_mem>>) attributes {dimension_semantics = [], scalar_prefetch = 0 : i64, scratch_operands = 2 : i64, tpu.core_type = #tpu.core_type<tc>} {
    tpu.enqueue_dma source(%arg2 : memref<256x256xf32, #tpu.memory_space<any>>) target(%arg4 : memref<256x256xf32, #tpu.memory_space<vmem>>) target_semaphore(%arg5 : memref<!tpu.dma_semaphore, #tpu.memory_space<semaphore_mem>>)
    %c0 = arith.constant 0 : index
    %c0_0 = arith.constant 0 : index
    %0 = vector.load %arg0[%c0, %c0_0] : memref<8x5xf32, #tpu.memory_space<vmem>>, vector<8x5xf32>
    %1 = vector.extract_strided_slice %0 {offsets = [0, 0], sizes = [8, 3], strides = [1, 1]} : vector<8x5xf32> to vector<8x3xf32>
    %2 = vector.extract_strided_slice %0 {offsets = [0, 3], sizes = [8, 1], strides = [1, 1]} : vector<8x5xf32> to vector<8x1xf32>
    %3 = vector.extract_strided_slice %0 {offsets = [0, 4], sizes = [8, 1], strides = [1, 1]} : vector<8x5xf32> to vector<8x1xf32>
    %c0_1 = arith.constant 0 : index
    %c0_2 = arith.constant 0 : index
    %4 = vector.load %arg1[%c0_1, %c0_2] : memref<8x256xf32, #tpu.memory_space<vmem>>, vector<8x256xf32>
    %5 = vector.extract_strided_slice %4 {offsets = [0, 0], sizes = [1, 256], strides = [1, 1]} : vector<8x256xf32> to vector<1x256xf32>
    %6 = vector.extract_strided_slice %4 {offsets = [1, 0], sizes = [1, 256], strides = [1, 1]} : vector<8x256xf32> to vector<1x256xf32>
    %7 = vector.extract_strided_slice %4 {offsets = [2, 0], sizes = [1, 256], strides = [1, 1]} : vector<8x256xf32> to vector<1x256xf32>
    %8 = vector.extract_strided_slice %4 {offsets = [3, 0], sizes = [1, 256], strides = [1, 1]} : vector<8x256xf32> to vector<1x256xf32>
    %9 = vector.extract_strided_slice %4 {offsets = [4, 0], sizes = [1, 256], strides = [1, 1]} : vector<8x256xf32> to vector<1x256xf32>
    %10 = vector.extract_strided_slice %1 {offsets = [0, 0], sizes = [8, 1], strides = [1, 1]} : vector<8x3xf32> to vector<8x1xf32>
    %11 = vector.extract_strided_slice %4 {offsets = [5, 0], sizes = [1, 256], strides = [1, 1]} : vector<8x256xf32> to vector<1x256xf32>
    %12 = vector.broadcast %10 : vector<8x1xf32> to vector<8x256xf32>
    %13 = vector.broadcast %11 : vector<1x256xf32> to vector<8x256xf32>
    %14 = arith.mulf %12, %13 : vector<8x256xf32>
    %15 = vector.broadcast %5 : vector<1x256xf32> to vector<8x256xf32>
    %16 = arith.addf %15, %14 : vector<8x256xf32>
    %17 = vector.extract_strided_slice %1 {offsets = [0, 1], sizes = [8, 1], strides = [1, 1]} : vector<8x3xf32> to vector<8x1xf32>
    %18 = vector.extract_strided_slice %4 {offsets = [6, 0], sizes = [1, 256], strides = [1, 1]} : vector<8x256xf32> to vector<1x256xf32>
    %19 = vector.broadcast %17 : vector<8x1xf32> to vector<8x256xf32>
    %20 = vector.broadcast %18 : vector<1x256xf32> to vector<8x256xf32>
    %21 = arith.mulf %19, %20 : vector<8x256xf32>
    %22 = arith.addf %16, %21 : vector<8x256xf32>
    %23 = vector.extract_strided_slice %1 {offsets = [0, 2], sizes = [8, 1], strides = [1, 1]} : vector<8x3xf32> to vector<8x1xf32>
    %24 = vector.extract_strided_slice %4 {offsets = [7, 0], sizes = [1, 256], strides = [1, 1]} : vector<8x256xf32> to vector<1x256xf32>
    %25 = vector.broadcast %23 : vector<8x1xf32> to vector<8x256xf32>
    %26 = vector.broadcast %24 : vector<1x256xf32> to vector<8x256xf32>
    %27 = arith.mulf %25, %26 : vector<8x256xf32>
    %28 = arith.addf %22, %27 : vector<8x256xf32>
    %cst = arith.constant 0.000000e+00 : f32
    %29 = vector.broadcast %cst : f32 to vector<8x256xf32>
    %30 = arith.maximumf %28, %29 : vector<8x256xf32>
    %cst_3 = arith.constant dense<0.000000e+00> : vector<256xf32>
    %31 = vector.multi_reduction <add>, %30, %cst_3 [0] : vector<8x256xf32> to vector<256xf32>
    %32 = vector.shape_cast %31 : vector<256xf32> to vector<1x256xf32>
    %cst_4 = arith.constant 1.250000e-01 : f32
    %33 = vector.broadcast %cst_4 : f32 to vector<1x256xf32>
    %34 = arith.mulf %32, %33 : vector<1x256xf32>
    %35 = arith.mulf %30, %30 : vector<8x256xf32>
    %cst_5 = arith.constant dense<0.000000e+00> : vector<256xf32>
    %36 = vector.multi_reduction <add>, %35, %cst_5 [0] : vector<8x256xf32> to vector<256xf32>
    %37 = vector.shape_cast %36 : vector<256xf32> to vector<1x256xf32>
    %cst_6 = arith.constant 1.250000e-01 : f32
    %38 = vector.broadcast %cst_6 : f32 to vector<1x256xf32>
    %39 = arith.mulf %37, %38 : vector<1x256xf32>
    %40 = arith.mulf %34, %34 : vector<1x256xf32>
    %41 = arith.subf %39, %40 : vector<1x256xf32>
    %cst_7 = arith.constant 9.99999974E-6 : f32
    %42 = vector.broadcast %cst_7 : f32 to vector<1x256xf32>
    %43 = arith.addf %41, %42 : vector<1x256xf32>
    %44 = math.rsqrt %43 : vector<1x256xf32>
    %45 = arith.mulf %6, %44 : vector<1x256xf32>
    %46 = vector.broadcast %45 : vector<1x256xf32> to vector<8x256xf32>
    %47 = arith.mulf %30, %46 : vector<8x256xf32>
    %cst_8 = arith.constant 0.000000e+00 : f32
    %48 = vector.broadcast %cst_8 : f32 to vector<1x256xf32>
    %49 = arith.subf %48, %34 : vector<1x256xf32>
    %50 = arith.mulf %49, %45 : vector<1x256xf32>
    %51 = vector.broadcast %50 : vector<1x256xf32> to vector<8x256xf32>
    %52 = arith.addf %47, %51 : vector<8x256xf32>
    tpu.wait_dma2 semaphore(%arg5 : memref<!tpu.dma_semaphore, #tpu.memory_space<semaphore_mem>>) src(%arg2 : memref<256x256xf32, #tpu.memory_space<any>>) dst(%arg4 : memref<256x256xf32, #tpu.memory_space<vmem>>)
    %c0_9 = arith.constant 0 : index
    %c0_10 = arith.constant 0 : index
    %53 = vector.load %arg4[%c0_9, %c0_10] : memref<256x256xf32, #tpu.memory_space<vmem>>, vector<256x256xf32>
    %cst_11 = arith.constant dense<0.000000e+00> : vector<8x256xf32>
    %54 = tpu.matmul %52, %53, %cst_11 {dimension_numbers = #tpu.dot_dimension_numbers<[1], [0], [0], [1], [0, 0, 1, 1], [], []>} : vector<8x256xf32>, vector<256x256xf32>, vector<8x256xf32> -> vector<8x256xf32>
    %55 = vector.broadcast %2 : vector<8x1xf32> to vector<8x256xf32>
    %56 = vector.broadcast %8 : vector<1x256xf32> to vector<8x256xf32>
    %57 = arith.mulf %55, %56 : vector<8x256xf32>
    %58 = arith.addf %54, %57 : vector<8x256xf32>
    %59 = vector.broadcast %7 : vector<1x256xf32> to vector<8x256xf32>
    %60 = arith.addf %58, %59 : vector<8x256xf32>
    %cst_12 = arith.constant 0.000000e+00 : f32
    %61 = vector.broadcast %cst_12 : f32 to vector<8x256xf32>
    %62 = arith.maximumf %60, %61 : vector<8x256xf32>
    %63 = vector.broadcast %9 : vector<1x256xf32> to vector<8x256xf32>
    %64 = arith.mulf %62, %63 : vector<8x256xf32>
    %cst_13 = arith.constant dense<0.000000e+00> : vector<8xf32>
    %65 = vector.multi_reduction <add>, %64, %cst_13 [1] : vector<8x256xf32> to vector<8xf32>
    %66 = vector.shape_cast %65 : vector<8xf32> to vector<8x1xf32>
    %67 = arith.addf %66, %3 : vector<8x1xf32>
    %c0_14 = arith.constant 0 : index
    %c0_15 = arith.constant 0 : index
    %68 = vector.load %arg3[%c0_14, %c0_15] : memref<8x1xf32, #tpu.memory_space<vmem>>, vector<8x1xf32>
    tpu.vector_store %arg3[%c0_14, %c0_15], %67 {strides = array<i32>} : memref<8x1xf32, #tpu.memory_space<vmem>>, vector<8x1xf32>,
    return
  }
}

</mosaic_0001>

<llo_original>
// kernel: tpu_custom_call.1
$region0: #{tpu_custom_call.1}
  #allocation0 [shape = 'u32[]', space=smem, size = 0x4, offset = 0x4, fixed_abs, tag = 'smem constant byte address 0x4 - core index']
  #allocation1 [shape = 'u32[144,128]{1,0:T(1,128)}', space=vmem, size = 0x12000, scoped, tag = 'internal scratch']
  #allocation2 [shape = 'f32[256,256]{1,0:T(8,128)}', space=vmem, size = 0x40000, scoped, tag = 'scratch operand']
  #allocation3 [shape = 's32[1]{0}', space=sflag, size = 0x4, scoped, tag = 'scratch operand']
  #allocation8 [shape = 's32[]', space=sflag, size = 0x4, offset = 0, fixed_abs, tag = 'sflag constant byte address 0x0 - dummy sync flag']
  #allocation9 [shape = 's32[]', space=sflag, size = 0x4, offset = 0, fixed_abs, tag = 'sflag constant byte address 0x0 - dummy sync flag']
  #allocation10 [shape = 'u32[]', space=smem, size = 0x4, offset = 0x44, fixed_abs, tag = 'smem constant byte address 0x44 - assertion arg 0']
  #allocation11 [shape = 'u32[]', space=smem, size = 0x4, offset = 0x48, fixed_abs, tag = 'smem constant byte address 0x48 - assertion arg 1']
  %s0 = inlined_call_operand.hbm [shape: f32[8,5], index: 0, kind: input, shape index: {}]
  %s1 = inlined_call_operand.hbm [shape: f32[8,256], index: 1, kind: input, shape index: {}]
  %s2 = inlined_call_operand.hbm [shape: f32[256,256], index: 2, kind: input, shape index: {}]
  %s3 = inlined_call_operand.vmem [shape: f32[8,1], index: 3, kind: output, shape index: {}]
  %s4 = sld [smem:[#allocation0]]
  $region30: #{tpu_custom_call.1} parent=0
    _
  %s6 = ssub.s32 1, %s4
  %s7 = scalar_select 0, %s6, %s4
  $region1: #{tpu_custom_call.1} parent=0
    #allocation4 [shape = 'u8[4096]{0}', space=vmem, size = 0x1000, scoped, tag = 'input window, operand 0, single buffered']
    #allocation5 [shape = 's32[1]{0}', space=sflag, size = 0x4, scoped, tag = 'scoped memory for tpu_custom_call.1']
    #allocation6 [shape = 'u8[8192]{0}', space=vmem, size = 0x2000, scoped, tag = 'input window, operand 1, single buffered']
    #allocation7 [shape = 's32[1]{0}', space=sflag, size = 0x4, scoped, tag = 'scoped memory for tpu_custom_call.1']
    %8 = vsyncpa [#allocation5], 0
    %9 = vsyncpa [#allocation7], 0
    // Predicated region
    $region2: #{tpu_custom_call.1} parent=1 // pred_check
      _
    $region3: #{tpu_custom_call.1} parent=1 // pred_check_branch
      %11 = sbr.rel (0) target = $region5
    $region4: #{tpu_custom_call.1} parent=1 // pred_region
      %s13 = ssub.s32 128, 128
      %14 = vsyncadd [#allocation5], %s13
      %s16 = sshll.u32 [#allocation4], 4
      %s17 = int_to_ptr.vmem [resolvable:$true] %s16
      %19 = dma.hbm_to_vmem [thread:$0]  %s0, 128, %s17, [#allocation5]
    $region5: #{tpu_custom_call.1} parent=1 // pred_fallthru
      _
    // Predicated region
    $region6: #{tpu_custom_call.1} parent=1 // pred_check
      _
    $region7: #{tpu_custom_call.1} parent=1 // pred_check_branch
      %21 = sbr.rel (0) target = $region9
    $region8: #{tpu_custom_call.1} parent=1 // pred_region
      %s23 = ssub.s32 256, 256
      %24 = vsyncadd [#allocation7], %s23
      %s26 = sshll.u32 [#allocation6], 4
      %s27 = int_to_ptr.vmem [resolvable:$true] %s26
      %29 = dma.hbm_to_vmem [thread:$0]  %s1, 256, %s27, [#allocation7]
    $region9: #{tpu_custom_call.1} parent=1 // pred_fallthru
      _
    // Predicated region
    $region10: #{tpu_custom_call.1} parent=1 // pred_check
      _
    $region11: #{tpu_custom_call.1} parent=1 // pred_check_branch
      %31 = sbr.rel (0) target = $region13
    $region12: #{tpu_custom_call.1} parent=1 // pred_region
      %32 = dma.done [#allocation5], 128
    $region13: #{tpu_custom_call.1} parent=1 // pred_fallthru
      _
    // Predicated region
    $region14: #{tpu_custom_call.1} parent=1 // pred_check
      _
    $region15: #{tpu_custom_call.1} parent=1 // pred_check_branch
      %34 = sbr.rel (0) target = $region17
    $region16: #{tpu_custom_call.1} parent=1 // pred_region
      %35 = dma.done [#allocation7], 256
    $region17: #{tpu_custom_call.1} parent=1 // pred_fallthru
      _
    // Predicated region
    $region18: #{tpu_custom_call.1} parent=1 // pred_check
      _
    $region19: #{tpu_custom_call.1} parent=1 // pred_check_branch
      %37 = sbr.rel target = $region21
    $region20: #{tpu_custom_call.1} parent=1 // pred_region
      %38 = sst [smem:[#allocation10]] [#allocation9]
      %39 = sst [smem:[#allocation11]] [#allocation8]
    $region21: #{tpu_custom_call.1} parent=1 // pred_fallthru
      _
    %41 = shalt.err (0)
    %s43 = sshll.u32 [#allocation2], 4
    %s44 = int_to_ptr.vmem [resolvable:$true] %s43
    %46 = dma.hbm_to_vmem [thread:$0]  %s2, 8192, %s44, [#allocation3]
    %v47 = vld [vmem:[#allocation4] sm:$0xff]
    %v48 = vld [vmem:[#allocation6] sm:$0xff]
    %v49 = vld [vmem:[#allocation6 + $0x8] sm:$0xff]
    %51 = vset.pattern.permute.xlu0 0
    %52 = vperm.xlu0 %51, %v47
    %v53 = vpop.permute.xlu0 %52
    %v55 = vlaneseq
    %v56 = vshrl.u32 %v55, 7
    %v57 = vsub.s32 5, %v56
    %v58 = vrot.slane %v48, %v57
    %v59 = vlaneseq
    %v60 = vshrl.u32 %v59, 7
    %v61 = vsub.s32 5, %v60
    %v62 = vrot.slane %v49, %v61
    %v63 = vmul.f32 %v53, %v58
    %v64 = vmul.f32 %v53, %v62
    %v65 = vlaneseq
    %v66 = vshrl.u32 %v65, 7
    %v67 = vsub.s32 0, %v66
    %v68 = vrot.slane %v48, %v67
    %v69 = vlaneseq
    %v70 = vshrl.u32 %v69, 7
    %v71 = vsub.s32 0, %v70
    %v72 = vrot.slane %v49, %v71
    %v73 = vadd.f32 %v68, %v63
    %v74 = vadd.f32 %v72, %v64
    %75 = vset.pattern.permute.xlu0 1
    %76 = vperm.xlu0 %75, %v47
    %v77 = vpop.permute.xlu0 %76
    %v79 = vlaneseq
    %v80 = vshrl.u32 %v79, 7
    %v81 = vsub.s32 6, %v80
    %v82 = vrot.slane %v48, %v81
    %v83 = vlaneseq
    %v84 = vshrl.u32 %v83, 7
    %v85 = vsub.s32 6, %v84
    %v86 = vrot.slane %v49, %v85
    %v87 = vmul.f32 %v77, %v82
    %v88 = vmul.f32 %v77, %v86
    %v89 = vadd.f32 %v73, %v87
    %v90 = vadd.f32 %v74, %v88
    %91 = vset.pattern.permute.xlu0 2
    %92 = vperm.xlu0 %91, %v47
    %v93 = vpop.permute.xlu0 %92
    %v95 = vlaneseq
    %v96 = vshrl.u32 %v95, 7
    %v97 = vsub.s32 7, %v96
    %v98 = vrot.slane %v48, %v97
    %v99 = vlaneseq
    %v100 = vshrl.u32 %v99, 7
    %v101 = vsub.s32 7, %v100
    %v102 = vrot.slane %v49, %v101
    %v103 = vmul.f32 %v93, %v98
    %v104 = vmul.f32 %v93, %v102
    %v105 = vadd.f32 %v89, %v103
    %v106 = vadd.f32 %v90, %v104
    %v107 = vmax.f32 %v105, 0.0
    %v108 = vmax.f32 %v106, 0.0
    %v109 = vrot.slane %v107, 4
    %v110 = vadd.f32 %v107, %v109
    %v111 = vrot.slane %v110, 2
    %v112 = vadd.f32 %v110, %v111
    %v113 = vrot.slane %v112, 1
    %v114 = vadd.f32 %v112, %v113
    %v115 = vrot.slane %v108, 4
    %v116 = vadd.f32 %v108, %v115
    %v117 = vrot.slane %v116, 2
    %v118 = vadd.f32 %v116, %v117
    %v119 = vrot.slane %v118, 1
    %v120 = vadd.f32 %v118, %v119
    %v121 = vmul.f32 %v114, 0.125
    %v122 = vmul.f32 %v120, 0.125
    %v123 = vmul.f32 %v107, %v107
    %v124 = vmul.f32 %v108, %v108
    %v125 = vrot.slane %v123, 4
    %v126 = vadd.f32 %v123, %v125
    %v127 = vrot.slane %v126, 2
    %v128 = vadd.f32 %v126, %v127
    %v129 = vrot.slane %v128, 1
    %v130 = vadd.f32 %v128, %v129
    %v131 = vrot.slane %v124, 4
    %v132 = vadd.f32 %v124, %v131
    %v133 = vrot.slane %v132, 2
    %v134 = vadd.f32 %v132, %v133
    %v135 = vrot.slane %v134, 1
    %v136 = vadd.f32 %v134, %v135
    %v137 = vmul.f32 %v130, 0.125
    %v138 = vmul.f32 %v136, 0.125
    %v139 = vmul.f32 %v121, %v121
    %v140 = vmul.f32 %v122, %v122
    %v141 = vsub.f32 %v137, %v139
    %v142 = vsub.f32 %v138, %v140
    %v143 = vadd.f32 %v141, 1e-05
    %v144 = vadd.f32 %v142, 1e-05
    %v145 = vrsqrt.pop %v143
    %v146 = vrsqrt.pop %v144
    %v147 = vmul.f32 %v48, %v145
    %v148 = vmul.f32 %v49, %v146
    %v149 = vlaneseq
    %v150 = vshrl.u32 %v149, 7
    %v151 = vsub.s32 1, %v150
    %v152 = vrot.slane %v147, %v151
    %v153 = vlaneseq
    %v154 = vshrl.u32 %v153, 7
    %v155 = vsub.s32 1, %v154
    %v156 = vrot.slane %v148, %v155
    %v157 = vmul.f32 %v107, %v152
    %v158 = vmul.f32 %v108, %v156
    %v159 = vsub.f32 0.0, %v121
    %v160 = vsub.f32 0.0, %v122
    %v161 = vmul.f32 %v159, %v147
    %v162 = vmul.f32 %v160, %v148
    %v163 = vlaneseq
    %v164 = vshrl.u32 %v163, 7
    %v165 = vsub.s32 1, %v164
    %v166 = vrot.slane %v161, %v165
    %v167 = vlaneseq
    %v168 = vshrl.u32 %v167, 7
    %v169 = vsub.s32 1, %v168
    %v170 = vrot.slane %v162, %v169
    %v171 = vadd.f32 %v157, %v166
    %v172 = vadd.f32 %v158, %v170
    %s173 = smul.u32 8, 32
    %s174 = smul.u32 %s173, 2
    %s175 = sshll.u32 %s174, 4
    %176 = dma.done [#allocation3], %s175
    %v177 = vld [vmem:[#allocation2] sm:$0xff]
    %v178 = vld [vmem:[#allocation2 + $0x8] sm:$0xff]
    %v179 = vld [vmem:[#allocation2 + $0x10] sm:$0xff]
    %v180 = vld [vmem:[#allocation2 + $0x18] sm:$0xff]
    %v181 = vld [vmem:[#allocation2 + $0x20] sm:$0xff]
    %v182 = vld [vmem:[#allocation2 + $0x28] sm:$0xff]
    %v183 = vld [vmem:[#allocation2 + $0x30] sm:$0xff]
    %v184 = vld [vmem:[#allocation2 + $0x38] sm:$0xff]
    %v185 = vld [vmem:[#allocation2 + $0x40] sm:$0xff]
    %v186 = vld [vmem:[#allocation2 + $0x48] sm:$0xff]
    %v187 = vld [vmem:[#allocation2 + $0x50] sm:$0xff]
    %v188 = vld [vmem:[#allocation2 + $0x58] sm:$0xff]
    %v189 = vld [vmem:[#allocation2 + $0x60] sm:$0xff]
    %v190 = vld [vmem:[#allocation2 + $0x68] sm:$0xff]
    %v191 = vld [vmem:[#allocation2 + $0x70] sm:$0xff]
    %v192 = vld [vmem:[#allocation2 + $0x78] sm:$0xff]
    %v193 = vld [vmem:[#allocation2 + $0x80] sm:$0xff]
    %v194 = vld [vmem:[#allocation2 + $0x88] sm:$0xff]
    %v195 = vld [vmem:[#allocation2 + $0x90] sm:$0xff]
    %v196 = vld [vmem:[#allocation2 + $0x98] sm:$0xff]
    %v197 = vld [vmem:[#allocation2 + $0xa0] sm:$0xff]
    %v198 = vld [vmem:[#allocation2 + $0xa8] sm:$0xff]
    %v199 = vld [vmem:[#allocation2 + $0xb0] sm:$0xff]
    %v200 = vld [vmem:[#allocation2 + $0xb8] sm:$0xff]
    %v201 = vld [vmem:[#allocation2 + $0xc0] sm:$0xff]
    %v202 = vld [vmem:[#allocation2 + $0xc8] sm:$0xff]
    %v203 = vld [vmem:[#allocation2 + $0xd0] sm:$0xff]
    %v204 = vld [vmem:[#allocation2 + $0xd8] sm:$0xff]
    %v205 = vld [vmem:[#allocation2 + $0xe0] sm:$0xff]
    %v206 = vld [vmem:[#allocation2 + $0xe8] sm:$0xff]
    %v207 = vld [vmem:[#allocation2 + $0xf0] sm:$0xff]
    %v208 = vld [vmem:[#allocation2 + $0xf8] sm:$0xff]
    %v209 = vld [vmem:[#allocation2 + $0x100] sm:$0xff]
    %v210 = vld [vmem:[#allocation2 + $0x108] sm:$0xff]
    %v211 = vld [vmem:[#allocation2 + $0x110] sm:$0xff]
    %v212 = vld [vmem:[#allocation2 + $0x118] sm:$0xff]
    %v213 = vld [vmem:[#allocation2 + $0x120] sm:$0xff]
    %v214 = vld [vmem:[#allocation2 + $0x128] sm:$0xff]
    %v215 = vld [vmem:[#allocation2 + $0x130] sm:$0xff]
    %v216 = vld [vmem:[#allocation2 + $0x138] sm:$0xff]
    %v217 = vld [vmem:[#allocation2 + $0x140] sm:$0xff]
    %v218 = vld [vmem:[#allocation2 + $0x148] sm:$0xff]
    %v219 = vld [vmem:[#allocation2 + $0x150] sm:$0xff]
    %v220 = vld [vmem:[#allocation2 + $0x158] sm:$0xff]
    %v221 = vld [vmem:[#allocation2 + $0x160] sm:$0xff]
    %v222 = vld [vmem:[#allocation2 + $0x168] sm:$0xff]
    %v223 = vld [vmem:[#allocation2 + $0x170] sm:$0xff]
    %v224 = vld [vmem:[#allocation2 + $0x178] sm:$0xff]
    %v225 = vld [vmem:[#allocation2 + $0x180] sm:$0xff]
    %v226 = vld [vmem:[#allocation2 + $0x188] sm:$0xff]
    %v227 = vld [vmem:[#allocation2 + $0x190] sm:$0xff]
    %v228 = vld [vmem:[#allocation2 + $0x198] sm:$0xff]
    %v229 = vld [vmem:[#allocation2 + $0x1a0] sm:$0xff]
    %v230 = vld [vmem:[#allocation2 + $0x1a8] sm:$0xff]
    %v231 = vld [vmem:[#allocation2 + $0x1b0] sm:$0xff]
    %v232 = vld [vmem:[#allocation2 + $0x1b8] sm:$0xff]
    %v233 = vld [vmem:[#allocation2 + $0x1c0] sm:$0xff]
    %v234 = vld [vmem:[#allocation2 + $0x1c8] sm:$0xff]
    %v235 = vld [vmem:[#allocation2 + $0x1d0] sm:$0xff]
    %v236 = vld [vmem:[#allocation2 + $0x1d8] sm:$0xff]
    %v237 = vld [vmem:[#allocation2 + $0x1e0] sm:$0xff]
    %v238 = vld [vmem:[#allocation2 + $0x1e8] sm:$0xff]
    %v239 = vld [vmem:[#allocation2 + $0x1f0] sm:$0xff]
    %v240 = vld [vmem:[#allocation2 + $0x1f8] sm:$0xff]
    %241 = vset.pattern.permute.xlu0 3
    %242 = vperm.xlu0 %241, %v47
    %v243 = vpop.permute.xlu0 %242
    %v245 = vlaneseq
    %v246 = vshrl.u32 %v245, 7
    %v247 = vsub.s32 3, %v246
    %v248 = vrot.slane %v48, %v247
    %v249 = vlaneseq
    %v250 = vshrl.u32 %v249, 7
    %v251 = vsub.s32 3, %v250
    %v252 = vrot.slane %v49, %v251
    %v253 = vmul.f32 %v243, %v248
    %v254 = vmul.f32 %v243, %v252
    %255 = vmatprep.subr.mxu0 %v208
    %256 = vmatpush1.msra.mxu0 %v207
    %257 = vmatprep.subr.mxu0 %v206
    %258 = vmatpush1.msra.mxu0 %v205
    %259 = vmatprep.subr.mxu0 %v204
    %260 = vmatpush1.msra.mxu0 %v203
    %261 = vmatprep.subr.mxu0 %v202
    %262 = vmatpush1.msra.mxu0 %v201
    %263 = vmatprep.subr.mxu0 %v200
    %264 = vmatpush1.msra.mxu0 %v199
    %265 = vmatprep.subr.mxu0 %v198
    %266 = vmatpush1.msra.mxu0 %v197
    %267 = vmatprep.subr.mxu0 %v196
    %268 = vmatpush1.msra.mxu0 %v195
    %269 = vmatprep.subr.mxu0 %v194
    %270 = vmatpush1.msra.mxu0 %v193
    %271 = vmatprep.subr.mxu0 %v192
    %272 = vmatpush1.msra.mxu0 %v191
    %273 = vmatprep.subr.mxu0 %v190
    %274 = vmatpush1.msra.mxu0 %v189
    %275 = vmatprep.subr.mxu0 %v188
    %276 = vmatpush1.msra.mxu0 %v187
    %277 = vmatprep.subr.mxu0 %v186
    %278 = vmatpush1.msra.mxu0 %v185
    %279 = vmatprep.subr.mxu0 %v184
    %280 = vmatpush1.msra.mxu0 %v183
    %281 = vmatprep.subr.mxu0 %v182
    %282 = vmatpush1.msra.mxu0 %v181
    %283 = vmatprep.subr.mxu0 %v180
    %284 = vmatpush1.msra.mxu0 %v179
    %285 = vmatprep.subr.mxu0 %v178
    %286 = vmatpush1.msra.mxu0 %v177
    %287 = vmatprep.subr.mxu0 %v240
    %288 = vmatpush2.msra.mxu0 %v239
    %289 = vmatprep.subr.mxu0 %v238
    %290 = vmatpush2.msra.mxu0 %v237
    %291 = vmatprep.subr.mxu0 %v236
    %292 = vmatpush2.msra.mxu0 %v235
    %293 = vmatprep.subr.mxu0 %v234
    %294 = vmatpush2.msra.mxu0 %v233
    %295 = vmatprep.subr.mxu0 %v232
    %296 = vmatpush2.msra.mxu0 %v231
    %297 = vmatprep.subr.mxu0 %v230
    %298 = vmatpush2.msra.mxu0 %v229
    %299 = vmatprep.subr.mxu0 %v228
    %300 = vmatpush2.msra.mxu0 %v227
    %301 = vmatprep.subr.mxu0 %v226
    %302 = vmatpush2.msra.mxu0 %v225
    %303 = vmatprep.subr.mxu0 %v224
    %304 = vmatpush2.msra.mxu0 %v223
    %305 = vmatprep.subr.mxu0 %v222
    %306 = vmatpush2.msra.mxu0 %v221
    %307 = vmatprep.subr.mxu0 %v220
    %308 = vmatpush2.msra.mxu0 %v219
    %309 = vmatprep.subr.mxu0 %v218
    %310 = vmatpush2.msra.mxu0 %v217
    %311 = vmatprep.subr.mxu0 %v216
    %312 = vmatpush2.msra.mxu0 %v215
    %313 = vmatprep.subr.mxu0 %v214
    %314 = vmatpush2.msra.mxu0 %v213
    %315 = vmatprep.subr.mxu0 %v212
    %316 = vmatpush2.msra.mxu0 %v211
    %317 = vmatprep.subr.mxu0 %v210
    %318 = vmatpush2.msra.mxu0 %v209
    %319 = vmatprep.mubr.f32.mxu0 %v172
    %320 = vmatmul.mubr.f32.gmra.mxu0 %v171
    %v321 = vpop.f32.mrf.mxu0
    %v322 = vadd.f32 %v253, %v321
    %v323 = vpop.f32.mrf.mxu0
    %v324 = vadd.f32 %v254, %v323
    %325 = vdwg.mxu0
    %v326 = vlaneseq
    %v327 = vshrl.u32 %v326, 7
    %v328 = vsub.s32 2, %v327
    %v329 = vrot.slane %v48, %v328
    %v330 = vlaneseq
    %v331 = vshrl.u32 %v330, 7
    %v332 = vsub.s32 2, %v331
    %v333 = vrot.slane %v49, %v332
    %v334 = vadd.f32 %v322, %v329
    %v335 = vadd.f32 %v324, %v333
    %v336 = vmax.f32 %v334, 0.0
    %v337 = vmax.f32 %v335, 0.0
    %v338 = vlaneseq
    %v339 = vshrl.u32 %v338, 7
    %v340 = vsub.s32 4, %v339
    %v341 = vrot.slane %v48, %v340
    %v342 = vlaneseq
    %v343 = vshrl.u32 %v342, 7
    %v344 = vsub.s32 4, %v343
    %v345 = vrot.slane %v49, %v344
    %v346 = vmul.f32 %v336, %v341
    %v347 = vmul.f32 %v337, %v345
    %v348 = vadd.f32 %v346, %v347
    %349 = vadd.xlane.f32.xlu0 %v348
    %v350 = vpop.xlane.xlu0 %349
    %v351 = vadd.f32 %v350, %v47
    %353 = vrot.lane.b32.xlu0 %v351, 124
    %v354 = vpop.permute.xlu0 %353
    %vm356 = vcmask 7168
    %357 = vst.msk [vmem:[%s3] sm:$0xff] %vm356, %v354
    // Predicated region
    $region22: #{tpu_custom_call.1} parent=1 // pred_check
      _
    $region23: #{tpu_custom_call.1} parent=1 // pred_check_branch
      %359 = sbr.rel (0) target = $region25
    $region24: #{tpu_custom_call.1} parent=1 // pred_region
      _
    $region25: #{tpu_custom_call.1} parent=1 // pred_fallthru
      _
    // Predicated region
    $region26: #{tpu_custom_call.1} parent=1 // pred_check
      _
    $region27: #{tpu_custom_call.1} parent=1 // pred_check_branch
      %361 = sbr.rel (0) target = $region29
    $region28: #{tpu_custom_call.1} parent=1 // pred_region
      _
    $region29: #{tpu_custom_call.1} parent=1 // pred_fallthru
      _
    %362 = vsyncpa [#allocation5], 1
    %363 = vsyncpa [#allocation7], 1
  %364 = vsyncmov [#allocation3]
  %s365 = vpop.sfrf %364
  %p366 = scmp.eq.s32.totalorder %s365, 0
  %p367 = pneg %p366
  %369 = shalt.err (%p367)

</llo_original>
